<compile_context>
chip_gen: v6e
topology: v6e:2x2x1
jax: 0.10.0
libtpu: 0.0.40
codegen_flags: <defaults>
</compile_context>

<pallas_src>
import functools

import jax
import jax.numpy as jnp
from jax.experimental import pallas as pl
from jax.experimental.pallas import tpu as pltpu

HIDDEN = 256
OUT = 3
OUT_PAD = 128  # lane-dense padded width for the fc3 output


def mlp_kernel(x_ref, w1_ref, b1_ref, w2_ref, b2_ref, w3_ref, b3_ref, o_ref):
    # In-kernel bf16 cast (x arrives in its HBM dtype; cast is cheap VPU work).
    x = x_ref[...].astype(jnp.bfloat16)                               # (block_b, 256)
    # fc1 + ReLU  (bf16 operands, f32 accumulation on the MXU)
    h1 = jnp.dot(x, w1_ref[...], preferred_element_type=jnp.float32) + b1_ref[...]
    h1 = jnp.maximum(h1, 0.0).astype(jnp.bfloat16)
    # fc2 + ReLU
    h2 = jnp.dot(h1, w2_ref[...], preferred_element_type=jnp.float32) + b2_ref[...]
    h2 = jnp.maximum(h2, 0.0).astype(jnp.bfloat16)
    # Dropout: inference-mode identity (PyTorch nn.Dropout is a no-op in eval()).
    # TODO(synk): training-mode dropout (p=0.5) via pltpu.prng_seed/prng_random_bits.
    # fc3 -> 128 padded lanes, stored bf16 (half the writeback bytes); padded
    # weight/bias lanes are exactly 0 so lanes 3..127 are exactly 0.
    o = jnp.dot(h2, w3_ref[...], preferred_element_type=jnp.float32) + b3_ref[...]
    o_ref[...] = o.astype(o_ref.dtype)


def prepare_params(params, compute_dtype=jnp.bfloat16):
    """One-time parameter prep (do NOT call per forward): transpose to (in, out),
    pad fc3 to 128 output lanes, cast weights to bf16. Biases stay f32 (added
    after the f32 MXU accumulation)."""
    w1, b1, w2, b2, w3, b3 = params
    w1_t = w1.T.astype(compute_dtype)                                          # (256, 256)
    w2_t = w2.T.astype(compute_dtype)                                          # (256, 256)
    w3_t = (jnp.zeros((HIDDEN, OUT_PAD), jnp.float32)
            .at[:, :OUT].set(w3.T)).astype(compute_dtype)                      # (256, 128)
    b1_r = b1.reshape(1, HIDDEN).astype(jnp.float32)
    b2_r = b2.reshape(1, HIDDEN).astype(jnp.float32)
    b3_r = jnp.zeros((1, OUT_PAD), jnp.float32).at[0, :OUT].set(b3)
    return (w1_t, b1_r, w2_t, b2_r, w3_t, b3_r)


def _round_up(n, m):
    return ((n + m - 1) // m) * m


def _pick_block_b(batch, requested):
    """Static (trace-time) batch-tile selection.
    - Small batch: one tile of round_up(B, 16) rows (no mostly-padded 256+ tile).
    - Large batch: big tiles (amortize ~0.35us/step), but at least 2 grid blocks
      so the 'parallel' batch axis can shard across v7x's two TensorCores."""
    if batch <= 128:
        return _round_up(max(batch, 1), 16)
    two_block_cap = _round_up((batch + 1) // 2, 16)
    return max(16, min(_round_up(requested, 16), two_block_cap))


def _vmem_limit_bytes(block_b, x_itemsize):
    """Only override the scoped-VMEM default when a very large tile needs it;
    stay well under v7x's 64 MiB physical VMEM."""
    x_bytes = 2 * block_b * HIDDEN * x_itemsize          # double-buffered input tile
    o_bytes = 2 * block_b * OUT_PAD * 2                  # double-buffered bf16 output tile
    w_bytes = 2 * (2 * HIDDEN * HIDDEN * 2 + HIDDEN * OUT_PAD * 2
                   + 2 * HIDDEN * 4 + OUT_PAD * 4)       # double-buffered weights/biases
    need = x_bytes + o_bytes + w_bytes
    if 2 * need <= 16 * 1024 * 1024:                     # fits the tightest (v5e) default
        return None
    return min(2 * need, 60 * 1024 * 1024)


@functools.partial(jax.jit, static_argnames=("block_b",))
def mlp_forward(x, prepped, *, block_b=1024):
    """x: (B, 256) -> (B, 3) float32."""
    w1_t, b1_r, w2_t, b2_r, w3_t, b3_r = prepped
    B = x.shape[0]
    bb = _pick_block_b(B, block_b)
    n_blocks = pl.cdiv(B, bb)

    out_padded = pl.pallas_call(
        mlp_kernel,
        out_shape=jax.ShapeDtypeStruct((B, OUT_PAD), jnp.bfloat16),
        grid_spec=pltpu.PrefetchScalarGridSpec(
            num_scalar_prefetch=0,
            grid=(n_blocks,),
            in_specs=[
                pl.BlockSpec((bb, HIDDEN), lambda i: (i, 0)),      # x tile (ragged tail masked)
                pl.BlockSpec((HIDDEN, HIDDEN), lambda i: (0, 0)),  # w1^T (VMEM-resident)
                pl.BlockSpec((1, HIDDEN), lambda i: (0, 0)),       # b1
                pl.BlockSpec((HIDDEN, HIDDEN), lambda i: (0, 0)),  # w2^T (VMEM-resident)
                pl.BlockSpec((1, HIDDEN), lambda i: (0, 0)),       # b2
                pl.BlockSpec((HIDDEN, OUT_PAD), lambda i: (0, 0)), # w3^T (padded)
                pl.BlockSpec((1, OUT_PAD), lambda i: (0, 0)),      # b3 (padded)
            ],
            out_specs=pl.BlockSpec((bb, OUT_PAD), lambda i: (i, 0)),
        ),
        compiler_params=pltpu.CompilerParams(
            dimension_semantics=("parallel",),   # batch axis shards across TCs on v7x
            vmem_limit_bytes=_vmem_limit_bytes(bb, x.dtype.itemsize)),
    )(x, w1_t, b1_r, w2_t, b2_r, w3_t, b3_r)

    # Slice + f32 cast fuse into consumers under jit; padded lanes are dropped here.
    return out_padded[:B, :OUT].astype(jnp.float32)


def init_params(key):
    """Deterministic init matching nn.Linear shapes (weight: (out, in), bias: (out,))."""
    k1, k2, k3, k4, k5, k6 = jax.random.split(key, 6)

    def lin(kw, kb, fan_in, fan_out):
        bound = 1.0 / jnp.sqrt(fan_in)
        w = jax.random.uniform(kw, (fan_out, fan_in), jnp.float32, -bound, bound)
        b = jax.random.uniform(kb, (fan_out,), jnp.float32, -bound, bound)
        return w, b

    w1, b1 = lin(k1, k2, 256, 256)
    w2, b2 = lin(k3, k4, 256, 256)
    w3, b3 = lin(k5, k6, 256, 3)
    return (w1, b1, w2, b2, w3, b3)


def _ref_bf16(x, prepped):
    """Plain-JAX reference with identical bf16 operands / f32 accumulation / bf16 store."""
    w1_t, b1_r, w2_t, b2_r, w3_t, b3_r = prepped
    xb = x.astype(jnp.bfloat16)
    h = jnp.maximum(jnp.dot(xb, w1_t, preferred_element_type=jnp.float32) + b1_r, 0.0)
    h = jnp.maximum(jnp.dot(h.astype(jnp.bfloat16), w2_t,
                            preferred_element_type=jnp.float32) + b2_r, 0.0)
    o = jnp.dot(h.astype(jnp.bfloat16), w3_t, preferred_element_type=jnp.float32) + b3_r
    return o[:, :OUT].astype(jnp.bfloat16).astype(jnp.float32)


def _ref_f32(x, params):
    """Full-f32 PyTorch-equivalent forward (eval mode: dropout is identity)."""
    w1, b1, w2, b2, w3, b3 = params
    h = jnp.maximum(x @ w1.T + b1, 0.0)
    h = jnp.maximum(h @ w2.T + b2, 0.0)
    return h @ w3.T + b3


if __name__ == "__main__":
    key = jax.random.PRNGKey(0)
    kx, kx2, kp = jax.random.split(key, 3)
    params = init_params(kp)
    # Weight transpose/pad/cast happens once, outside the forward path.
    prepped = jax.tree_util.tree_map(jax.block_until_ready, prepare_params(params))

    # Small-batch path (single 16-row tile, partial block masked).
    B = 8
    x = jax.random.normal(kx, (B, 256), jnp.float32)
    out = jax.block_until_ready(mlp_forward(x, prepped))
    assert out.shape == (B, OUT)
    assert jnp.allclose(out, _ref_bf16(x, prepped), atol=2e-2, rtol=2e-2)
    assert float(jnp.max(jnp.abs(out - _ref_f32(x, params)))) < 0.1

    # Multi-block path (2 grid blocks, ragged tail block masked).
    B2 = 300
    x2 = jax.random.normal(kx2, (B2, 256), jnp.float32)
    out2 = jax.block_until_ready(mlp_forward(x2, prepped))
    assert out2.shape == (B2, OUT)
    assert jnp.allclose(out2, _ref_bf16(x2, prepped), atol=2e-2, rtol=2e-2)
    assert float(jnp.max(jnp.abs(out2 - _ref_f32(x2, params)))) < 0.1

    print("KERNEL_OK")
</pallas_src>

<mosaic_0001>
module attributes {stable_mosaic.version = 11 : i64} {
  func.func @mlp_kernel(%arg0: i32, %arg1: memref<16x256xf32, #tpu.memory_space<vmem>>, %arg2: memref<256x256xbf16, #tpu.memory_space<vmem>>, %arg3: memref<1x256xf32, #tpu.memory_space<vmem>>, %arg4: memref<256x256xbf16, #tpu.memory_space<vmem>>, %arg5: memref<1x256xf32, #tpu.memory_space<vmem>>, %arg6: memref<256x128xbf16, #tpu.memory_space<vmem>>, %arg7: memref<1x128xf32, #tpu.memory_space<vmem>>, %arg8: memref<16x128xbf16, #tpu.memory_space<vmem>>) attributes {dimension_semantics = [#tpu.dimension_semantics<parallel>], iteration_bounds = array<i64: 1>, scalar_prefetch = 0 : i64, scratch_operands = 0 : i64, tpu.core_type = #tpu.core_type<tc>, window_params = [{transform_indices = @transform_0, window_bounds = array<i64: 16, 256>}, {pipeline_mode = #tpu.pipeline_mode<synchronous>, transform_indices = @transform_1, window_bounds = array<i64: 256, 256>}, {pipeline_mode = #tpu.pipeline_mode<synchronous>, transform_indices = @transform_2, window_bounds = array<i64: 1, 256>}, {pipeline_mode = #tpu.pipeline_mode<synchronous>, transform_indices = @transform_3, window_bounds = array<i64: 256, 256>}, {pipeline_mode = #tpu.pipeline_mode<synchronous>, transform_indices = @transform_4, window_bounds = array<i64: 1, 256>}, {pipeline_mode = #tpu.pipeline_mode<synchronous>, transform_indices = @transform_5, window_bounds = array<i64: 256, 128>}, {pipeline_mode = #tpu.pipeline_mode<synchronous>, transform_indices = @transform_6, window_bounds = array<i64: 1, 128>}, {transform_indices = @transform_7, window_bounds = array<i64: 16, 128>}]} {
    %c0 = arith.constant 0 : index
    %c0_0 = arith.constant 0 : index
    %0 = vector.load %arg1[%c0, %c0_0] : memref<16x256xf32, #tpu.memory_space<vmem>>, vector<16x256xf32>
    %1 = arith.truncf %0 : vector<16x256xf32> to vector<16x256xbf16>
    %c0_1 = arith.constant 0 : index
    %c0_2 = arith.constant 0 : index
    %2 = vector.load %arg2[%c0_1, %c0_2] : memref<256x256xbf16, #tpu.memory_space<vmem>>, vector<256x256xbf16>
    %cst = arith.constant dense<0.000000e+00> : vector<16x256xf32>
    %3 = tpu.matmul %1, %2, %cst {dimension_numbers = #tpu.dot_dimension_numbers<[1], [0], [0], [1], [0, 0, 1, 1], [], []>} : vector<16x256xbf16>, vector<256x256xbf16>, vector<16x256xf32> -> vector<16x256xf32>
    %c0_3 = arith.constant 0 : index
    %c0_4 = arith.constant 0 : index
    %4 = vector.load %arg3[%c0_3, %c0_4] : memref<1x256xf32, #tpu.memory_space<vmem>>, vector<1x256xf32>
    %5 = vector.broadcast %4 : vector<1x256xf32> to vector<16x256xf32>
    %6 = arith.addf %3, %5 : vector<16x256xf32>
    %cst_5 = arith.constant 0.000000e+00 : f32
    %7 = vector.broadcast %cst_5 : f32 to vector<16x256xf32>
    %8 = arith.maximumf %6, %7 : vector<16x256xf32>
    %9 = arith.truncf %8 : vector<16x256xf32> to vector<16x256xbf16>
    %c0_6 = arith.constant 0 : index
    %c0_7 = arith.constant 0 : index
    %10 = vector.load %arg4[%c0_6, %c0_7] : memref<256x256xbf16, #tpu.memory_space<vmem>>, vector<256x256xbf16>
    %cst_8 = arith.constant dense<0.000000e+00> : vector<16x256xf32>
    %11 = tpu.matmul %9, %10, %cst_8 {dimension_numbers = #tpu.dot_dimension_numbers<[1], [0], [0], [1], [0, 0, 1, 1], [], []>} : vector<16x256xbf16>, vector<256x256xbf16>, vector<16x256xf32> -> vector<16x256xf32>
    %c0_9 = arith.constant 0 : index
    %c0_10 = arith.constant 0 : index
    %12 = vector.load %arg5[%c0_9, %c0_10] : memref<1x256xf32, #tpu.memory_space<vmem>>, vector<1x256xf32>
    %13 = vector.broadcast %12 : vector<1x256xf32> to vector<16x256xf32>
    %14 = arith.addf %11, %13 : vector<16x256xf32>
    %cst_11 = arith.constant 0.000000e+00 : f32
    %15 = vector.broadcast %cst_11 : f32 to vector<16x256xf32>
    %16 = arith.maximumf %14, %15 : vector<16x256xf32>
    %17 = arith.truncf %16 : vector<16x256xf32> to vector<16x256xbf16>
    %c0_12 = arith.constant 0 : index
    %c0_13 = arith.constant 0 : index
    %18 = vector.load %arg6[%c0_12, %c0_13] : memref<256x128xbf16, #tpu.memory_space<vmem>>, vector<256x128xbf16>
    %cst_14 = arith.constant dense<0.000000e+00> : vector<16x128xf32>
    %19 = tpu.matmul %17, %18, %cst_14 {dimension_numbers = #tpu.dot_dimension_numbers<[1], [0], [0], [1], [0, 0, 1, 1], [], []>} : vector<16x256xbf16>, vector<256x128xbf16>, vector<16x128xf32> -> vector<16x128xf32>
    %c0_15 = arith.constant 0 : index
    %c0_16 = arith.constant 0 : index
    %20 = vector.load %arg7[%c0_15, %c0_16] : memref<1x128xf32, #tpu.memory_space<vmem>>, vector<1x128xf32>
    %21 = vector.broadcast %20 : vector<1x128xf32> to vector<16x128xf32>
    %22 = arith.addf %19, %21 : vector<16x128xf32>
    %23 = arith.truncf %22 : vector<16x128xf32> to vector<16x128xbf16>
    %c0_17 = arith.constant 0 : index
    %c0_18 = arith.constant 0 : index
    %24 = vector.load %arg8[%c0_17, %c0_18] : memref<16x128xbf16, #tpu.memory_space<vmem>>, vector<16x128xbf16>
    tpu.vector_store %arg8[%c0_17, %c0_18], %23 {strides = array<i32>} : memref<16x128xbf16, #tpu.memory_space<vmem>>, vector<16x128xbf16>,
    return
  }
  func.func @transform_0(%arg0: i32) -> (i32, i32) {
    %c0_i32 = arith.constant 0 : i32
    %c0_i32_0 = arith.constant 0 : i32
    return %arg0, %c0_i32 : i32, i32
  }
  func.func @transform_1(%arg0: i32) -> (i32, i32) {
    %c0_i32 = arith.constant 0 : i32
    %c0_i32_0 = arith.constant 0 : i32
    %c0_i32_1 = arith.constant 0 : i32
    return %c0_i32, %c0_i32_0 : i32, i32
  }
  func.func @transform_2(%arg0: i32) -> (i32, i32) {
    %c0_i32 = arith.constant 0 : i32
    %c0_i32_0 = arith.constant 0 : i32
    %c0_i32_1 = arith.constant 0 : i32
    return %c0_i32, %c0_i32_0 : i32, i32
  }
  func.func @transform_3(%arg0: i32) -> (i32, i32) {
    %c0_i32 = arith.constant 0 : i32
    %c0_i32_0 = arith.constant 0 : i32
    %c0_i32_1 = arith.constant 0 : i32
    return %c0_i32, %c0_i32_0 : i32, i32
  }
  func.func @transform_4(%arg0: i32) -> (i32, i32) {
    %c0_i32 = arith.constant 0 : i32
    %c0_i32_0 = arith.constant 0 : i32
    %c0_i32_1 = arith.constant 0 : i32
    return %c0_i32, %c0_i32_0 : i32, i32
  }
  func.func @transform_5(%arg0: i32) -> (i32, i32) {
    %c0_i32 = arith.constant 0 : i32
    %c0_i32_0 = arith.constant 0 : i32
    %c0_i32_1 = arith.constant 0 : i32
    return %c0_i32, %c0_i32_0 : i32, i32
  }
  func.func @transform_6(%arg0: i32) -> (i32, i32) {
    %c0_i32 = arith.constant 0 : i32
    %c0_i32_0 = arith.constant 0 : i32
    %c0_i32_1 = arith.constant 0 : i32
    return %c0_i32, %c0_i32_0 : i32, i32
  }
  func.func @transform_7(%arg0: i32) -> (i32, i32) {
    %c0_i32 = arith.constant 0 : i32
    %c0_i32_0 = arith.constant 0 : i32
    return %arg0, %c0_i32 : i32, i32
  }
}

</mosaic_0001>

<llo_original>
// kernel: mlp_forward.1
$region0: #{mlp_forward.1}
  #allocation0 [shape = 'u32[]', space=smem, size = 0x4, offset = 0x4, fixed_abs, tag = 'smem constant byte address 0x4 - core index']
  #allocation1 [shape = 'u32[144,128]{1,0:T(1,128)}', space=vmem, size = 0x12000, scoped, tag = 'internal scratch']
  %s0 = inlined_call_operand.hbm [shape: f32[8,256], index: 0, kind: input, shape index: {}]
  %s1 = inlined_call_operand.hbm [shape: bf16[256,256], index: 1, kind: input, shape index: {}]
  %s2 = inlined_call_operand.vmem [shape: f32[1,256], index: 2, kind: input, shape index: {}]
  %s3 = inlined_call_operand.hbm [shape: bf16[256,256], index: 3, kind: input, shape index: {}]
  %s4 = inlined_call_operand.vmem [shape: f32[1,256], index: 4, kind: input, shape index: {}]
  %s5 = inlined_call_operand.hbm [shape: bf16[256,128], index: 5, kind: input, shape index: {}]
  %s6 = inlined_call_operand.vmem [shape: f32[1,128], index: 6, kind: input, shape index: {}]
  %s7 = inlined_call_operand.vmem [shape: bf16[8,128], index: 7, kind: output, shape index: {}]
  %s8 = sld [smem:[#allocation0]]
  $region84: #{mlp_forward.1} parent=0
    _
  %s10 = ssub.s32 1, %s8
  %s11 = scalar_select 0, %s10, %s8
  $region1: #{mlp_forward.1} parent=0
    #allocation2 [shape = 'u8[16384]{0}', space=vmem, size = 0x4000, scoped, tag = 'input window, operand 0, single buffered']
    #allocation3 [shape = 's32[1]{0}', space=sflag, size = 0x4, scoped, tag = 'scoped memory for mlp_forward.1']
    #allocation4 [shape = 'u8[131072]{0}', space=vmem, size = 0x20000, scoped, tag = 'input window, operand 1, single buffered']
    #allocation5 [shape = 's32[1]{0}', space=sflag, size = 0x4, scoped, tag = 'scoped memory for mlp_forward.1']
    #allocation6 [shape = 'u8[131072]{0}', space=vmem, size = 0x20000, scoped, tag = 'input window, operand 3, single buffered']
    #allocation7 [shape = 'u8[65536]{0}', space=vmem, size = 0x10000, scoped, tag = 'input window, operand 5, single buffered']
    #allocation8 [shape = 's32[1]{0}', space=sflag, size = 0x4, scoped, tag = 'scoped memory for mlp_forward.1']
    #allocation9 [shape = 'u8[4096]{0}', space=vmem, size = 0x1000, scoped, tag = 'output window, operand 0, single buffered']
    %12 = vsyncpa [#allocation3], 0
    %13 = vsyncpa [#allocation5], 0
    %14 = vsyncpa [#allocation8], 0
    // Predicated region
    $region2: #{mlp_forward.1} parent=1 // pred_check
      _
    $region3: #{mlp_forward.1} parent=1 // pred_check_branch
      %16 = sbr.rel (0) target = $region5
    $region4: #{mlp_forward.1} parent=1 // pred_region
      %s18 = ssub.s32 512, 256
      %19 = vsyncadd [#allocation3], %s18
      %s20 = sshll.u32 [#allocation2], 4
      %s21 = int_to_ptr.vmem [resolvable:$true] %s20
      %26 = dma.hbm_to_vmem [thread:$0]  %s0, 256, %s21, [#allocation3], 256, 256, 16
    $region5: #{mlp_forward.1} parent=1 // pred_fallthru
      _
    // Predicated region
    $region6: #{mlp_forward.1} parent=1 // pred_check
      _
    $region7: #{mlp_forward.1} parent=1 // pred_check_branch
      %28 = sbr.rel (0) target = $region9
    $region8: #{mlp_forward.1} parent=1 // pred_region
      %s30 = ssub.s32 4096, 4096
      %31 = vsyncadd [#allocation5], %s30
      %s32 = sshll.u32 [#allocation4], 4
      %s33 = int_to_ptr.vmem [resolvable:$true] %s32
      %38 = dma.hbm_to_vmem [thread:$0]  %s1, 4096, %s33, [#allocation5], 128, 128, 8
    $region9: #{mlp_forward.1} parent=1 // pred_fallthru
      _
    // Predicated region
    $region10: #{mlp_forward.1} parent=1 // pred_check
      _
    $region11: #{mlp_forward.1} parent=1 // pred_check_branch
      %40 = sbr.rel (0) target = $region13
    $region12: #{mlp_forward.1} parent=1 // pred_region
      _
    $region13: #{mlp_forward.1} parent=1 // pred_fallthru
      _
    // Predicated region
    $region14: #{mlp_forward.1} parent=1 // pred_check
      _
    $region15: #{mlp_forward.1} parent=1 // pred_check_branch
      %42 = sbr.rel (0) target = $region17
    $region16: #{mlp_forward.1} parent=1 // pred_region
      %s44 = ssub.s32 4096, 4096
      %45 = vsyncadd [#allocation5], %s44
      %s46 = sshll.u32 [#allocation6], 4
      %s47 = int_to_ptr.vmem [resolvable:$true] %s46
      %52 = dma.hbm_to_vmem [thread:$0]  %s3, 4096, %s47, [#allocation5], 128, 128, 8
    $region17: #{mlp_forward.1} parent=1 // pred_fallthru
      _
    // Predicated region
    $region18: #{mlp_forward.1} parent=1 // pred_check
      _
    $region19: #{mlp_forward.1} parent=1 // pred_check_branch
      %54 = sbr.rel (0) target = $region21
    $region20: #{mlp_forward.1} parent=1 // pred_region
      _
    $region21: #{mlp_forward.1} parent=1 // pred_fallthru
      _
    // Predicated region
    $region22: #{mlp_forward.1} parent=1 // pred_check
      _
    $region23: #{mlp_forward.1} parent=1 // pred_check_branch
      %56 = sbr.rel (0) target = $region25
    $region24: #{mlp_forward.1} parent=1 // pred_region
      %s58 = ssub.s32 2048, 2048
      %59 = vsyncadd [#allocation8], %s58
      %s60 = sshll.u32 [#allocation7], 4
      %s61 = int_to_ptr.vmem [resolvable:$true] %s60
      %66 = dma.hbm_to_vmem [thread:$0]  %s5, 2048, %s61, [#allocation8], 64, 64, 4
    $region25: #{mlp_forward.1} parent=1 // pred_fallthru
      _
    // Predicated region
    $region26: #{mlp_forward.1} parent=1 // pred_check
      _
    $region27: #{mlp_forward.1} parent=1 // pred_check_branch
      %68 = sbr.rel (0) target = $region29
    $region28: #{mlp_forward.1} parent=1 // pred_region
      _
    $region29: #{mlp_forward.1} parent=1 // pred_fallthru
      _
    // Predicated region
    $region30: #{mlp_forward.1} parent=1 // pred_check
      _
    $region31: #{mlp_forward.1} parent=1 // pred_check_branch
      %70 = sbr.rel (0) target = $region33
    $region32: #{mlp_forward.1} parent=1 // pred_region
      %71 = dma.done [#allocation3], 512
    $region33: #{mlp_forward.1} parent=1 // pred_fallthru
      _
    // Predicated region
    $region34: #{mlp_forward.1} parent=1 // pred_check
      _
    $region35: #{mlp_forward.1} parent=1 // pred_check_branch
      %73 = sbr.rel (0) target = $region37
    $region36: #{mlp_forward.1} parent=1 // pred_region
      %74 = dma.done [#allocation5], 4096
    $region37: #{mlp_forward.1} parent=1 // pred_fallthru
      _
    // Predicated region
    $region38: #{mlp_forward.1} parent=1 // pred_check
      _
    $region39: #{mlp_forward.1} parent=1 // pred_check_branch
      %76 = sbr.rel (0) target = $region41
    $region40: #{mlp_forward.1} parent=1 // pred_region
      %77 = dma.done [#allocation5], 4096
    $region41: #{mlp_forward.1} parent=1 // pred_fallthru
      _
    // Predicated region
    $region42: #{mlp_forward.1} parent=1 // pred_check
      _
    $region43: #{mlp_forward.1} parent=1 // pred_check_branch
      %79 = sbr.rel (0) target = $region45
    $region44: #{mlp_forward.1} parent=1 // pred_region
      %80 = dma.done [#allocation8], 2048
    $region45: #{mlp_forward.1} parent=1 // pred_fallthru
      _
    %v82 = vld [vmem:[#allocation2] sm:$0xff]
    %v83 = vld [vmem:[#allocation2 + $0x8] sm:$0xff]
    %v84 = vld [vmem:[#allocation2 + $0x10] sm:$0xff]
    %v85 = vld [vmem:[#allocation2 + $0x18] sm:$0xff]
    %v86 = vpack.c.bf16 %v84, %v82
    %v87 = vpack.c.bf16 %v85, %v83
    %v88 = vld [vmem:[#allocation4] sm:$0xff]
    %v89 = vld [vmem:[#allocation4 + $0x8] sm:$0xff]
    %v90 = vld [vmem:[#allocation4 + $0x10] sm:$0xff]
    %v91 = vld [vmem:[#allocation4 + $0x18] sm:$0xff]
    %v92 = vld [vmem:[#allocation4 + $0x20] sm:$0xff]
    %v93 = vld [vmem:[#allocation4 + $0x28] sm:$0xff]
    %v94 = vld [vmem:[#allocation4 + $0x30] sm:$0xff]
    %v95 = vld [vmem:[#allocation4 + $0x38] sm:$0xff]
    %v96 = vld [vmem:[#allocation4 + $0x40] sm:$0xff]
    %v97 = vld [vmem:[#allocation4 + $0x48] sm:$0xff]
    %v98 = vld [vmem:[#allocation4 + $0x50] sm:$0xff]
    %v99 = vld [vmem:[#allocation4 + $0x58] sm:$0xff]
    %v100 = vld [vmem:[#allocation4 + $0x60] sm:$0xff]
    %v101 = vld [vmem:[#allocation4 + $0x68] sm:$0xff]
    %v102 = vld [vmem:[#allocation4 + $0x70] sm:$0xff]
    %v103 = vld [vmem:[#allocation4 + $0x78] sm:$0xff]
    %v104 = vld [vmem:[#allocation4 + $0x80] sm:$0xff]
    %v105 = vld [vmem:[#allocation4 + $0x88] sm:$0xff]
    %v106 = vld [vmem:[#allocation4 + $0x90] sm:$0xff]
    %v107 = vld [vmem:[#allocation4 + $0x98] sm:$0xff]
    %v108 = vld [vmem:[#allocation4 + $0xa0] sm:$0xff]
    %v109 = vld [vmem:[#allocation4 + $0xa8] sm:$0xff]
    %v110 = vld [vmem:[#allocation4 + $0xb0] sm:$0xff]
    %v111 = vld [vmem:[#allocation4 + $0xb8] sm:$0xff]
    %v112 = vld [vmem:[#allocation4 + $0xc0] sm:$0xff]
    %v113 = vld [vmem:[#allocation4 + $0xc8] sm:$0xff]
    %v114 = vld [vmem:[#allocation4 + $0xd0] sm:$0xff]
    %v115 = vld [vmem:[#allocation4 + $0xd8] sm:$0xff]
    %v116 = vld [vmem:[#allocation4 + $0xe0] sm:$0xff]
    %v117 = vld [vmem:[#allocation4 + $0xe8] sm:$0xff]
    %v118 = vld [vmem:[#allocation4 + $0xf0] sm:$0xff]
    %v119 = vld [vmem:[#allocation4 + $0xf8] sm:$0xff]
    %v120 = vld [vmem:[%s2] sm:$0x3]
    %v122 = vlaneseq
    %v123 = vshrl.u32 %v122, 7
    %v124 = vsub.s32 0, %v123
    %v125 = vrot.slane %v120, %v124
    %v126 = vlaneseq
    %v127 = vshrl.u32 %v126, 7
    %v128 = vsub.s32 1, %v127
    %v129 = vrot.slane %v120, %v128
    %v164 = vunpack.c.l.b16 %v88
    %v165 = vunpack.c.h.b16 %v88
    %v166 = vunpack.c.l.b16 %v89
    %v167 = vunpack.c.h.b16 %v89
    %v168 = vunpack.c.l.b16 %v90
    %v169 = vunpack.c.h.b16 %v90
    %v170 = vunpack.c.l.b16 %v91
    %v171 = vunpack.c.h.b16 %v91
    %v172 = vunpack.c.l.b16 %v92
    %v173 = vunpack.c.h.b16 %v92
    %v174 = vunpack.c.l.b16 %v93
    %v175 = vunpack.c.h.b16 %v93
    %v176 = vunpack.c.l.b16 %v94
    %v177 = vunpack.c.h.b16 %v94
    %v178 = vunpack.c.l.b16 %v95
    %v179 = vunpack.c.h.b16 %v95
    %v180 = vunpack.c.l.b16 %v96
    %v181 = vunpack.c.h.b16 %v96
    %v182 = vunpack.c.l.b16 %v97
    %v183 = vunpack.c.h.b16 %v97
    %v184 = vunpack.c.l.b16 %v98
    %v185 = vunpack.c.h.b16 %v98
    %v186 = vunpack.c.l.b16 %v99
    %v187 = vunpack.c.h.b16 %v99
    %v188 = vunpack.c.l.b16 %v100
    %v189 = vunpack.c.h.b16 %v100
    %v190 = vunpack.c.l.b16 %v101
    %v191 = vunpack.c.h.b16 %v101
    %v192 = vunpack.c.l.b16 %v102
    %v193 = vunpack.c.h.b16 %v102
    %v194 = vunpack.c.l.b16 %v103
    %v195 = vunpack.c.h.b16 %v103
    %v196 = vunpack.c.l.b16 %v104
    %v197 = vunpack.c.h.b16 %v104
    %v198 = vunpack.c.l.b16 %v105
    %v199 = vunpack.c.h.b16 %v105
    %v200 = vunpack.c.l.b16 %v106
    %v201 = vunpack.c.h.b16 %v106
    %v202 = vunpack.c.l.b16 %v107
    %v203 = vunpack.c.h.b16 %v107
    %v204 = vunpack.c.l.b16 %v108
    %v205 = vunpack.c.h.b16 %v108
    %v206 = vunpack.c.l.b16 %v109
    %v207 = vunpack.c.h.b16 %v109
    %v208 = vunpack.c.l.b16 %v110
    %v209 = vunpack.c.h.b16 %v110
    %v210 = vunpack.c.l.b16 %v111
    %v211 = vunpack.c.h.b16 %v111
    %v212 = vunpack.c.l.b16 %v112
    %v213 = vunpack.c.h.b16 %v112
    %v214 = vunpack.c.l.b16 %v113
    %v215 = vunpack.c.h.b16 %v113
    %v216 = vunpack.c.l.b16 %v114
    %v217 = vunpack.c.h.b16 %v114
    %v218 = vunpack.c.l.b16 %v115
    %v219 = vunpack.c.h.b16 %v115
    %v220 = vunpack.c.l.b16 %v116
    %v221 = vunpack.c.h.b16 %v116
    %v222 = vunpack.c.l.b16 %v117
    %v223 = vunpack.c.h.b16 %v117
    %v224 = vunpack.c.l.b16 %v118
    %v225 = vunpack.c.h.b16 %v118
    %v226 = vunpack.c.l.b16 %v119
    %v227 = vunpack.c.h.b16 %v119
    %v228 = vpack.c.b16 %v166, %v164
    %v229 = vpack.c.b16 %v167, %v165
    %v230 = vpack.c.b16 %v170, %v168
    %v231 = vpack.c.b16 %v171, %v169
    %v232 = vpack.c.b16 %v174, %v172
    %v233 = vpack.c.b16 %v175, %v173
    %v234 = vpack.c.b16 %v178, %v176
    %v235 = vpack.c.b16 %v179, %v177
    %v236 = vpack.c.b16 %v182, %v180
    %v237 = vpack.c.b16 %v183, %v181
    %v238 = vpack.c.b16 %v186, %v184
    %v239 = vpack.c.b16 %v187, %v185
    %v240 = vpack.c.b16 %v190, %v188
    %v241 = vpack.c.b16 %v191, %v189
    %v242 = vpack.c.b16 %v194, %v192
    %v243 = vpack.c.b16 %v195, %v193
    %v244 = vpack.c.b16 %v198, %v196
    %v245 = vpack.c.b16 %v199, %v197
    %v246 = vpack.c.b16 %v202, %v200
    %v247 = vpack.c.b16 %v203, %v201
    %v248 = vpack.c.b16 %v206, %v204
    %v249 = vpack.c.b16 %v207, %v205
    %v250 = vpack.c.b16 %v210, %v208
    %v251 = vpack.c.b16 %v211, %v209
    %v252 = vpack.c.b16 %v214, %v212
    %v253 = vpack.c.b16 %v215, %v213
    %v254 = vpack.c.b16 %v218, %v216
    %v255 = vpack.c.b16 %v219, %v217
    %v256 = vpack.c.b16 %v222, %v220
    %v257 = vpack.c.b16 %v223, %v221
    %v258 = vpack.c.b16 %v226, %v224
    %v259 = vpack.c.b16 %v227, %v225
    %292 = vmatprep.subr.bf16.mxu0 %v243
    %293 = vmatpush1.bf16.msra.mxu0 %v242
    %294 = vmatprep.subr.bf16.mxu0 %v241
    %295 = vmatpush1.bf16.msra.mxu0 %v240
    %296 = vmatprep.subr.bf16.mxu0 %v239
    %297 = vmatpush1.bf16.msra.mxu0 %v238
    %298 = vmatprep.subr.bf16.mxu0 %v237
    %299 = vmatpush1.bf16.msra.mxu0 %v236
    %300 = vmatprep.subr.bf16.mxu0 %v235
    %301 = vmatpush1.bf16.msra.mxu0 %v234
    %302 = vmatprep.subr.bf16.mxu0 %v233
    %303 = vmatpush1.bf16.msra.mxu0 %v232
    %304 = vmatprep.subr.bf16.mxu0 %v231
    %305 = vmatpush1.bf16.msra.mxu0 %v230
    %306 = vmatprep.subr.bf16.mxu0 %v229
    %307 = vmatpush1.bf16.msra.mxu0 %v228
    %308 = vmatprep.subr.bf16.mxu0 %v259
    %309 = vmatpush2.bf16.msra.mxu0 %v258
    %310 = vmatprep.subr.bf16.mxu0 %v257
    %311 = vmatpush2.bf16.msra.mxu0 %v256
    %312 = vmatprep.subr.bf16.mxu0 %v255
    %313 = vmatpush2.bf16.msra.mxu0 %v254
    %314 = vmatprep.subr.bf16.mxu0 %v253
    %315 = vmatpush2.bf16.msra.mxu0 %v252
    %316 = vmatprep.subr.bf16.mxu0 %v251
    %317 = vmatpush2.bf16.msra.mxu0 %v250
    %318 = vmatprep.subr.bf16.mxu0 %v249
    %319 = vmatpush2.bf16.msra.mxu0 %v248
    %320 = vmatprep.subr.bf16.mxu0 %v247
    %321 = vmatpush2.bf16.msra.mxu0 %v246
    %322 = vmatprep.subr.bf16.mxu0 %v245
    %323 = vmatpush2.bf16.msra.mxu0 %v244
    %324 = vmatprep.mubr.bf16.mxu0 %v87
    %325 = vmatmul.mubr.bf16.gmra.mxu0 %v86
    %v326 = vpop.f32.mrf.mxu0
    %v327 = vadd.f32 %v125, %v326
    %v328 = vpop.f32.mrf.mxu0
    %v329 = vadd.f32 %v129, %v328
    %v330 = vpop.f32.mrf.mxu0
    %v331 = vadd.f32 %v125, %v330
    %v332 = vpop.f32.mrf.mxu0
    %v333 = vadd.f32 %v129, %v332
    %334 = vdwg.mxu0
    %v335 = vmax.f32 %v327, 0.0
    %v336 = vmax.f32 %v329, 0.0
    %v337 = vmax.f32 %v331, 0.0
    %v338 = vmax.f32 %v333, 0.0
    %v339 = vpack.c.bf16 %v337, %v335
    %v340 = vpack.c.bf16 %v338, %v336
    %v341 = vld [vmem:[#allocation6] sm:$0xff]
    %v342 = vld [vmem:[#allocation6 + $0x8] sm:$0xff]
    %v343 = vld [vmem:[#allocation6 + $0x10] sm:$0xff]
    %v344 = vld [vmem:[#allocation6 + $0x18] sm:$0xff]
    %v345 = vld [vmem:[#allocation6 + $0x20] sm:$0xff]
    %v346 = vld [vmem:[#allocation6 + $0x28] sm:$0xff]
    %v347 = vld [vmem:[#allocation6 + $0x30] sm:$0xff]
    %v348 = vld [vmem:[#allocation6 + $0x38] sm:$0xff]
    %v349 = vld [vmem:[#allocation6 + $0x40] sm:$0xff]
    %v350 = vld [vmem:[#allocation6 + $0x48] sm:$0xff]
    %v351 = vld [vmem:[#allocation6 + $0x50] sm:$0xff]
    %v352 = vld [vmem:[#allocation6 + $0x58] sm:$0xff]
    %v353 = vld [vmem:[#allocation6 + $0x60] sm:$0xff]
    %v354 = vld [vmem:[#allocation6 + $0x68] sm:$0xff]
    %v355 = vld [vmem:[#allocation6 + $0x70] sm:$0xff]
    %v356 = vld [vmem:[#allocation6 + $0x78] sm:$0xff]
    %v357 = vld [vmem:[#allocation6 + $0x80] sm:$0xff]
    %v358 = vld [vmem:[#allocation6 + $0x88] sm:$0xff]
    %v359 = vld [vmem:[#allocation6 + $0x90] sm:$0xff]
    %v360 = vld [vmem:[#allocation6 + $0x98] sm:$0xff]
    %v361 = vld [vmem:[#allocation6 + $0xa0] sm:$0xff]
    %v362 = vld [vmem:[#allocation6 + $0xa8] sm:$0xff]
    %v363 = vld [vmem:[#allocation6 + $0xb0] sm:$0xff]
    %v364 = vld [vmem:[#allocation6 + $0xb8] sm:$0xff]
    %v365 = vld [vmem:[#allocation6 + $0xc0] sm:$0xff]
    %v366 = vld [vmem:[#allocation6 + $0xc8] sm:$0xff]
    %v367 = vld [vmem:[#allocation6 + $0xd0] sm:$0xff]
    %v368 = vld [vmem:[#allocation6 + $0xd8] sm:$0xff]
    %v369 = vld [vmem:[#allocation6 + $0xe0] sm:$0xff]
    %v370 = vld [vmem:[#allocation6 + $0xe8] sm:$0xff]
    %v371 = vld [vmem:[#allocation6 + $0xf0] sm:$0xff]
    %v372 = vld [vmem:[#allocation6 + $0xf8] sm:$0xff]
    %v373 = vld [vmem:[%s4] sm:$0x3]
    %v375 = vlaneseq
    %v376 = vshrl.u32 %v375, 7
    %v377 = vsub.s32 0, %v376
    %v378 = vrot.slane %v373, %v377
    %v379 = vlaneseq
    %v380 = vshrl.u32 %v379, 7
    %v381 = vsub.s32 1, %v380
    %v382 = vrot.slane %v373, %v381
    %v417 = vunpack.c.l.b16 %v341
    %v418 = vunpack.c.h.b16 %v341
    %v419 = vunpack.c.l.b16 %v342
    %v420 = vunpack.c.h.b16 %v342
    %v421 = vunpack.c.l.b16 %v343
    %v422 = vunpack.c.h.b16 %v343
    %v423 = vunpack.c.l.b16 %v344
    %v424 = vunpack.c.h.b16 %v344
    %v425 = vunpack.c.l.b16 %v345
    %v426 = vunpack.c.h.b16 %v345
    %v427 = vunpack.c.l.b16 %v346
    %v428 = vunpack.c.h.b16 %v346
    %v429 = vunpack.c.l.b16 %v347
    %v430 = vunpack.c.h.b16 %v347
    %v431 = vunpack.c.l.b16 %v348
    %v432 = vunpack.c.h.b16 %v348
    %v433 = vunpack.c.l.b16 %v349
    %v434 = vunpack.c.h.b16 %v349
    %v435 = vunpack.c.l.b16 %v350
    %v436 = vunpack.c.h.b16 %v350
    %v437 = vunpack.c.l.b16 %v351
    %v438 = vunpack.c.h.b16 %v351
    %v439 = vunpack.c.l.b16 %v352
    %v440 = vunpack.c.h.b16 %v352
    %v441 = vunpack.c.l.b16 %v353
    %v442 = vunpack.c.h.b16 %v353
    %v443 = vunpack.c.l.b16 %v354
    %v444 = vunpack.c.h.b16 %v354
    %v445 = vunpack.c.l.b16 %v355
    %v446 = vunpack.c.h.b16 %v355
    %v447 = vunpack.c.l.b16 %v356
    %v448 = vunpack.c.h.b16 %v356
    %v449 = vunpack.c.l.b16 %v357
    %v450 = vunpack.c.h.b16 %v357
    %v451 = vunpack.c.l.b16 %v358
    %v452 = vunpack.c.h.b16 %v358
    %v453 = vunpack.c.l.b16 %v359
    %v454 = vunpack.c.h.b16 %v359
    %v455 = vunpack.c.l.b16 %v360
    %v456 = vunpack.c.h.b16 %v360
    %v457 = vunpack.c.l.b16 %v361
    %v458 = vunpack.c.h.b16 %v361
    %v459 = vunpack.c.l.b16 %v362
    %v460 = vunpack.c.h.b16 %v362
    %v461 = vunpack.c.l.b16 %v363
    %v462 = vunpack.c.h.b16 %v363
    %v463 = vunpack.c.l.b16 %v364
    %v464 = vunpack.c.h.b16 %v364
    %v465 = vunpack.c.l.b16 %v365
    %v466 = vunpack.c.h.b16 %v365
    %v467 = vunpack.c.l.b16 %v366
    %v468 = vunpack.c.h.b16 %v366
    %v469 = vunpack.c.l.b16 %v367
    %v470 = vunpack.c.h.b16 %v367
    %v471 = vunpack.c.l.b16 %v368
    %v472 = vunpack.c.h.b16 %v368
    %v473 = vunpack.c.l.b16 %v369
    %v474 = vunpack.c.h.b16 %v369
    %v475 = vunpack.c.l.b16 %v370
    %v476 = vunpack.c.h.b16 %v370
    %v477 = vunpack.c.l.b16 %v371
    %v478 = vunpack.c.h.b16 %v371
    %v479 = vunpack.c.l.b16 %v372
    %v480 = vunpack.c.h.b16 %v372
    %v481 = vpack.c.b16 %v419, %v417
    %v482 = vpack.c.b16 %v420, %v418
    %v483 = vpack.c.b16 %v423, %v421
    %v484 = vpack.c.b16 %v424, %v422
    %v485 = vpack.c.b16 %v427, %v425
    %v486 = vpack.c.b16 %v428, %v426
    %v487 = vpack.c.b16 %v431, %v429
    %v488 = vpack.c.b16 %v432, %v430
    %v489 = vpack.c.b16 %v435, %v433
    %v490 = vpack.c.b16 %v436, %v434
    %v491 = vpack.c.b16 %v439, %v437
    %v492 = vpack.c.b16 %v440, %v438
    %v493 = vpack.c.b16 %v443, %v441
    %v494 = vpack.c.b16 %v444, %v442
    %v495 = vpack.c.b16 %v447, %v445
    %v496 = vpack.c.b16 %v448, %v446
    %v497 = vpack.c.b16 %v451, %v449
    %v498 = vpack.c.b16 %v452, %v450
    %v499 = vpack.c.b16 %v455, %v453
    %v500 = vpack.c.b16 %v456, %v454
    %v501 = vpack.c.b16 %v459, %v457
    %v502 = vpack.c.b16 %v460, %v458
    %v503 = vpack.c.b16 %v463, %v461
    %v504 = vpack.c.b16 %v464, %v462
    %v505 = vpack.c.b16 %v467, %v465
    %v506 = vpack.c.b16 %v468, %v466
    %v507 = vpack.c.b16 %v471, %v469
    %v508 = vpack.c.b16 %v472, %v470
    %v509 = vpack.c.b16 %v475, %v473
    %v510 = vpack.c.b16 %v476, %v474
    %v511 = vpack.c.b16 %v479, %v477
    %v512 = vpack.c.b16 %v480, %v478
    %545 = vmatprep.subr.bf16.mxu0 %v496
    %546 = vmatpush1.bf16.msra.mxu0 %v495
    %547 = vmatprep.subr.bf16.mxu0 %v494
    %548 = vmatpush1.bf16.msra.mxu0 %v493
    %549 = vmatprep.subr.bf16.mxu0 %v492
    %550 = vmatpush1.bf16.msra.mxu0 %v491
    %551 = vmatprep.subr.bf16.mxu0 %v490
    %552 = vmatpush1.bf16.msra.mxu0 %v489
    %553 = vmatprep.subr.bf16.mxu0 %v488
    %554 = vmatpush1.bf16.msra.mxu0 %v487
    %555 = vmatprep.subr.bf16.mxu0 %v486
    %556 = vmatpush1.bf16.msra.mxu0 %v485
    %557 = vmatprep.subr.bf16.mxu0 %v484
    %558 = vmatpush1.bf16.msra.mxu0 %v483
    %559 = vmatprep.subr.bf16.mxu0 %v482
    %560 = vmatpush1.bf16.msra.mxu0 %v481
    %561 = vmatprep.subr.bf16.mxu0 %v512
    %562 = vmatpush2.bf16.msra.mxu0 %v511
    %563 = vmatprep.subr.bf16.mxu0 %v510
    %564 = vmatpush2.bf16.msra.mxu0 %v509
    %565 = vmatprep.subr.bf16.mxu0 %v508
    %566 = vmatpush2.bf16.msra.mxu0 %v507
    %567 = vmatprep.subr.bf16.mxu0 %v506
    %568 = vmatpush2.bf16.msra.mxu0 %v505
    %569 = vmatprep.subr.bf16.mxu0 %v504
    %570 = vmatpush2.bf16.msra.mxu0 %v503
    %571 = vmatprep.subr.bf16.mxu0 %v502
    %572 = vmatpush2.bf16.msra.mxu0 %v501
    %573 = vmatprep.subr.bf16.mxu0 %v500
    %574 = vmatpush2.bf16.msra.mxu0 %v499
    %575 = vmatprep.subr.bf16.mxu0 %v498
    %576 = vmatpush2.bf16.msra.mxu0 %v497
    %577 = vmatprep.mubr.bf16.mxu0 %v340
    %578 = vmatmul.mubr.bf16.gmra.mxu0 %v339
    %v579 = vpop.f32.mrf.mxu0
    %v580 = vadd.f32 %v378, %v579
    %v581 = vpop.f32.mrf.mxu0
    %v582 = vadd.f32 %v382, %v581
    %v583 = vpop.f32.mrf.mxu0
    %v584 = vadd.f32 %v378, %v583
    %v585 = vpop.f32.mrf.mxu0
    %v586 = vadd.f32 %v382, %v585
    %587 = vdwg.mxu0
    %v588 = vmax.f32 %v580, 0.0
    %v589 = vmax.f32 %v582, 0.0
    %v590 = vmax.f32 %v584, 0.0
    %v591 = vmax.f32 %v586, 0.0
    %v592 = vpack.c.bf16 %v590, %v588
    %v593 = vpack.c.bf16 %v591, %v589
    %v594 = vld [vmem:[#allocation7] sm:$0xf]
    %v595 = vld [vmem:[#allocation7 + $0x4] sm:$0xf]
    %v596 = vld [vmem:[#allocation7 + $0x8] sm:$0xf]
    %v597 = vld [vmem:[#allocation7 + $0xc] sm:$0xf]
    %v598 = vld [vmem:[#allocation7 + $0x10] sm:$0xf]
    %v599 = vld [vmem:[#allocation7 + $0x14] sm:$0xf]
    %v600 = vld [vmem:[#allocation7 + $0x18] sm:$0xf]
    %v601 = vld [vmem:[#allocation7 + $0x1c] sm:$0xf]
    %v602 = vld [vmem:[#allocation7 + $0x20] sm:$0xf]
    %v603 = vld [vmem:[#allocation7 + $0x24] sm:$0xf]
    %v604 = vld [vmem:[#allocation7 + $0x28] sm:$0xf]
    %v605 = vld [vmem:[#allocation7 + $0x2c] sm:$0xf]
    %v606 = vld [vmem:[#allocation7 + $0x30] sm:$0xf]
    %v607 = vld [vmem:[#allocation7 + $0x34] sm:$0xf]
    %v608 = vld [vmem:[#allocation7 + $0x38] sm:$0xf]
    %v609 = vld [vmem:[#allocation7 + $0x3c] sm:$0xf]
    %v610 = vld [vmem:[#allocation7 + $0x40] sm:$0xf]
    %v611 = vld [vmem:[#allocation7 + $0x44] sm:$0xf]
    %v612 = vld [vmem:[#allocation7 + $0x48] sm:$0xf]
    %v613 = vld [vmem:[#allocation7 + $0x4c] sm:$0xf]
    %v614 = vld [vmem:[#allocation7 + $0x50] sm:$0xf]
    %v615 = vld [vmem:[#allocation7 + $0x54] sm:$0xf]
    %v616 = vld [vmem:[#allocation7 + $0x58] sm:$0xf]
    %v617 = vld [vmem:[#allocation7 + $0x5c] sm:$0xf]
    %v618 = vld [vmem:[#allocation7 + $0x60] sm:$0xf]
    %v619 = vld [vmem:[#allocation7 + $0x64] sm:$0xf]
    %v620 = vld [vmem:[#allocation7 + $0x68] sm:$0xf]
    %v621 = vld [vmem:[#allocation7 + $0x6c] sm:$0xf]
    %v622 = vld [vmem:[#allocation7 + $0x70] sm:$0xf]
    %v623 = vld [vmem:[#allocation7 + $0x74] sm:$0xf]
    %v624 = vld [vmem:[#allocation7 + $0x78] sm:$0xf]
    %v625 = vld [vmem:[#allocation7 + $0x7c] sm:$0xf]
    %v626 = vld [vmem:[%s6] sm:$0x1]
    %v628 = vlaneseq
    %v629 = vshrl.u32 %v628, 7
    %v630 = vsub.s32 0, %v629
    %v631 = vrot.slane %v626, %v630
    %v665 = vunpack.c.l.b16 %v594
    %v666 = vunpack.c.l.b16 %v595
    %v667 = vunpack.c.l.b16 %v596
    %v668 = vunpack.c.l.b16 %v597
    %v669 = vunpack.c.l.b16 %v598
    %v670 = vunpack.c.l.b16 %v599
    %v671 = vunpack.c.l.b16 %v600
    %v672 = vunpack.c.l.b16 %v601
    %v673 = vunpack.c.l.b16 %v602
    %v674 = vunpack.c.l.b16 %v603
    %v675 = vunpack.c.l.b16 %v604
    %v676 = vunpack.c.l.b16 %v605
    %v677 = vunpack.c.l.b16 %v606
    %v678 = vunpack.c.l.b16 %v607
    %v679 = vunpack.c.l.b16 %v608
    %v680 = vunpack.c.l.b16 %v609
    %v681 = vunpack.c.l.b16 %v610
    %v682 = vunpack.c.l.b16 %v611
    %v683 = vunpack.c.l.b16 %v612
    %v684 = vunpack.c.l.b16 %v613
    %v685 = vunpack.c.l.b16 %v614
    %v686 = vunpack.c.l.b16 %v615
    %v687 = vunpack.c.l.b16 %v616
    %v688 = vunpack.c.l.b16 %v617
    %v689 = vunpack.c.l.b16 %v618
    %v690 = vunpack.c.l.b16 %v619
    %v691 = vunpack.c.l.b16 %v620
    %v692 = vunpack.c.l.b16 %v621
    %v693 = vunpack.c.l.b16 %v622
    %v694 = vunpack.c.l.b16 %v623
    %v695 = vunpack.c.l.b16 %v624
    %v696 = vunpack.c.l.b16 %v625
    %v697 = vpack.c.b16 %v666, %v665
    %v698 = vpack.c.b16 %v668, %v667
    %v699 = vpack.c.b16 %v670, %v669
    %v700 = vpack.c.b16 %v672, %v671
    %v701 = vpack.c.b16 %v674, %v673
    %v702 = vpack.c.b16 %v676, %v675
    %v703 = vpack.c.b16 %v678, %v677
    %v704 = vpack.c.b16 %v680, %v679
    %v705 = vpack.c.b16 %v682, %v681
    %v706 = vpack.c.b16 %v684, %v683
    %v707 = vpack.c.b16 %v686, %v685
    %v708 = vpack.c.b16 %v688, %v687
    %v709 = vpack.c.b16 %v690, %v689
    %v710 = vpack.c.b16 %v692, %v691
    %v711 = vpack.c.b16 %v694, %v693
    %v712 = vpack.c.b16 %v696, %v695
    %729 = vmatprep.subr.bf16.mxu0 0
    %730 = vmatpush1.bf16.msra.mxu0 %v704
    %731 = vmatprep.subr.bf16.mxu0 0
    %732 = vmatpush1.bf16.msra.mxu0 %v703
    %733 = vmatprep.subr.bf16.mxu0 0
    %734 = vmatpush1.bf16.msra.mxu0 %v702
    %735 = vmatprep.subr.bf16.mxu0 0
    %736 = vmatpush1.bf16.msra.mxu0 %v701
    %737 = vmatprep.subr.bf16.mxu0 0
    %738 = vmatpush1.bf16.msra.mxu0 %v700
    %739 = vmatprep.subr.bf16.mxu0 0
    %740 = vmatpush1.bf16.msra.mxu0 %v699
    %741 = vmatprep.subr.bf16.mxu0 0
    %742 = vmatpush1.bf16.msra.mxu0 %v698
    %743 = vmatprep.subr.bf16.mxu0 0
    %744 = vmatpush1.bf16.msra.mxu0 %v697
    %745 = vmatprep.subr.bf16.mxu0 0
    %746 = vmatpush2.bf16.msra.mxu0 %v712
    %747 = vmatprep.subr.bf16.mxu0 0
    %748 = vmatpush2.bf16.msra.mxu0 %v711
    %749 = vmatprep.subr.bf16.mxu0 0
    %750 = vmatpush2.bf16.msra.mxu0 %v710
    %751 = vmatprep.subr.bf16.mxu0 0
    %752 = vmatpush2.bf16.msra.mxu0 %v709
    %753 = vmatprep.subr.bf16.mxu0 0
    %754 = vmatpush2.bf16.msra.mxu0 %v708
    %755 = vmatprep.subr.bf16.mxu0 0
    %756 = vmatpush2.bf16.msra.mxu0 %v707
    %757 = vmatprep.subr.bf16.mxu0 0
    %758 = vmatpush2.bf16.msra.mxu0 %v706
    %759 = vmatprep.subr.bf16.mxu0 0
    %760 = vmatpush2.bf16.msra.mxu0 %v705
    %761 = vmatprep.mubr.bf16.mxu0 %v593
    %762 = vmatmul.mubr.bf16.gmra.mxu0 %v592
    %v763 = vpop.f32.mrf.mxu0
    %v764 = vadd.f32 %v631, %v763
    %v765 = vpop.f32.mrf.mxu0
    %v766 = vpop.f32.mrf.mxu0
    %v767 = vadd.f32 %v631, %v766
    %v768 = vpop.f32.mrf.mxu0
    %769 = vdwg.mxu0
    %v770 = vpack.c.bf16 %v767, %v764
    %v772 = vunpack.c.l.b16 %v770
    %v773 = vunpack.c.h.b16 %v770
    %v774 = vpack.c.b16 %v772, %v772
    %v775 = vpack.c.b16 %v773, %v773
    %778 = vst [vmem:[#allocation9] sm:$0xf] %v774
    %779 = vst [vmem:[#allocation9 + $0x4] sm:$0xf] %v775
    // Predicated region
    $region46: #{mlp_forward.1} parent=1 // pred_check
      _
    $region47: #{mlp_forward.1} parent=1 // pred_check_branch
      %781 = sbr.rel (0) target = $region49
    $region48: #{mlp_forward.1} parent=1 // pred_region
      // Predicated region
      $region50: #{mlp_forward.1} parent=48 // pred_check
        _
      $region51: #{mlp_forward.1} parent=48 // pred_check_branch
        %783 = sbr.rel (0) target = $region53
      $region52: #{mlp_forward.1} parent=48 // pred_region
        // Predicated region
        $region54: #{mlp_forward.1} parent=52 // pred_check
          _
        $region55: #{mlp_forward.1} parent=52 // pred_check_branch
          %785 = sbr.rel target = $region57
        $region56: #{mlp_forward.1} parent=52 // pred_region
          // Predicated region
          $region69: #{mlp_forward.1} parent=56 // pred_check
            _
          $region70: #{mlp_forward.1} parent=56 // pred_check_branch
            %801 = sbr.rel (0) target = $region72
          $region71: #{mlp_forward.1} parent=56 // pred_region
            %s803 = ssub.s32 16, 1
            loop: start=0, step=1, limit=1
            $region73: #{mlp_forward.1} parent=71 // loop_pre_header
              _
            $region74: #{mlp_forward.1} parent=71 // loop_header
              %s805 = sphi 0, %s809
              %p806 = scmp.ge.s32.totalorder %s805, 1
              %s810 = sphi [#allocation9], [#allocation9]
              %s811 = sphi %s7, %s7
            $region75: #{mlp_forward.1} parent=71 // loop_header_branch
              %808 = sbr.rel (%p806) target = $region79
            $region76: #{mlp_forward.1} parent=71 // loop_body
              %v812 = vld [vmem:[%s810] sm:%s803]
              %813 = vst [vmem:[%s811] sm:%s803] %v812
            $region77: #{mlp_forward.1} parent=71 // loop_footer
              %s809 = sadd.s32 1, %s805
            $region78: #{mlp_forward.1} parent=71 // loop_footer_branch
              %804 = sbr.rel target = $region74
            $region79: #{mlp_forward.1} parent=71 // loop_exit
              _
          $region72: #{mlp_forward.1} parent=56 // pred_fallthru
            _
        $region57: #{mlp_forward.1} parent=52 // pred_fallthru
          _
        // Predicated region
        $region58: #{mlp_forward.1} parent=52 // pred_check
          _
        $region59: #{mlp_forward.1} parent=52 // pred_check_branch
          %787 = sbr.rel (0) target = $region61
        $region60: #{mlp_forward.1} parent=52 // pred_region
          %s789 = ssub.s32 16, 1
          loop: start=0, step=1, limit=1
          $region62: #{mlp_forward.1} parent=60 // loop_pre_header
            _
          $region63: #{mlp_forward.1} parent=60 // loop_header
            %s791 = sphi 0, %s795
            %p792 = scmp.ge.s32.totalorder %s791, 1
            %s796 = sphi [#allocation9], [#allocation9]
            %s797 = sphi %s7, %s7
          $region64: #{mlp_forward.1} parent=60 // loop_header_branch
            %794 = sbr.rel (%p792) target = $region68
          $region65: #{mlp_forward.1} parent=60 // loop_body
            %v798 = vld [vmem:[%s796] sm:%s789]
            %799 = vst [vmem:[%s797] sm:%s789] %v798
          $region66: #{mlp_forward.1} parent=60 // loop_footer
            %s795 = sadd.s32 1, %s791
          $region67: #{mlp_forward.1} parent=60 // loop_footer_branch
            %790 = sbr.rel target = $region63
          $region68: #{mlp_forward.1} parent=60 // loop_exit
            _
        $region61: #{mlp_forward.1} parent=52 // pred_fallthru
          _
      $region53: #{mlp_forward.1} parent=48 // pred_fallthru
        _
      %814 = vnop
    $region49: #{mlp_forward.1} parent=1 // pred_fallthru
      _
    // Predicated region
    $region80: #{mlp_forward.1} parent=1 // pred_check
      _
    $region81: #{mlp_forward.1} parent=1 // pred_check_branch
      %816 = sbr.rel (0) target = $region83
    $region82: #{mlp_forward.1} parent=1 // pred_region
      _
    $region83: #{mlp_forward.1} parent=1 // pred_fallthru
      _
    %817 = vsyncpa [#allocation3], 1
    %818 = vsyncpa [#allocation5], 1
    %819 = vsyncpa [#allocation8], 1

</llo_original>
